<compile_context>
chip_gen: v7x
topology: tpu7x:2x2x1
jax: 0.10.0
libtpu: 0.0.40
codegen_flags: <defaults>
</compile_context>

<pallas_src>
import jax
import jax.numpy as jnp
from jax.experimental import pallas as pl
from jax.experimental.pallas import tpu as pltpu

_LANE = 128
_TARGET_TILE_BYTES = 2 * 1024 * 1024  # ~2 MiB tiles: near-roofline streaming, fits all gens


def _normalize_kernel(mean_ref, inv_std_ref, x_ref, o_ref):
    # Affine transform in f32 on the VPU; params broadcast from a (rows, 1) column.
    xf = x_ref[...].astype(jnp.float32)
    o_ref[...] = ((xf - mean_ref[...]) * inv_std_ref[...]).astype(o_ref.dtype)


def _choose_block(rows, cols, itemsize):
    """Pick a lane-dense (block_rows, block_cols) tile of roughly _TARGET_TILE_BYTES."""
    sub = max(8, 32 // itemsize)  # (8,128) f32, (16,128) bf16, (32,128) int8/fp8
    total = rows * cols * itemsize
    if total <= _TARGET_TILE_BYTES:
        return rows, cols  # whole array in a single block
    row_bytes = cols * itemsize
    if rows <= sub:
        block_rows = rows  # full second-minor extent is always legal
    else:
        groups = max(1, _TARGET_TILE_BYTES // (sub * row_bytes))
        block_rows = min(sub * groups, (rows // sub) * sub)
    if block_rows * row_bytes <= _TARGET_TILE_BYTES:
        return block_rows, cols
    # Even one sublane-group of full-width rows is too big: tile the lane axis too.
    block_cols = (_TARGET_TILE_BYTES // (block_rows * itemsize) // _LANE) * _LANE
    block_cols = max(_LANE, min(block_cols, cols))
    return block_rows, block_cols


def normalize(x, mean, std):
    """x: (N, C, H, W); mean, std: (C,). Returns (x - mean) / std per channel."""
    N, C, H, W = x.shape
    P = H * W
    rows = N * C
    itemsize = jnp.dtype(x.dtype).itemsize

    # Flatten each contiguous plane into a lane-dense row; pad lanes to 128 if needed.
    P_pad = ((P + _LANE - 1) // _LANE) * _LANE
    x2 = x.reshape(rows, P)
    if P_pad != P:
        x2 = jnp.pad(x2, ((0, 0), (0, P_pad - P)))

    # Per-channel parameters in f32; fold the divide into a reciprocal-multiply.
    mean_f = mean.astype(jnp.float32)
    inv_std_f = 1.0 / std.astype(jnp.float32)
    mean_rows = jnp.tile(mean_f, N).reshape(rows, 1)        # row r belongs to channel r % C
    inv_std_rows = jnp.tile(inv_std_f, N).reshape(rows, 1)

    block_rows, block_cols = _choose_block(rows, P_pad, itemsize)
    grid = (pl.cdiv(rows, block_rows), pl.cdiv(P_pad, block_cols))

    out2 = pl.pallas_call(
        _normalize_kernel,
        out_shape=jax.ShapeDtypeStruct((rows, P_pad), x.dtype),
        grid=grid,
        in_specs=[
            pl.BlockSpec((block_rows, 1), lambda i, j: (i, 0)),           # mean  (f32)
            pl.BlockSpec((block_rows, 1), lambda i, j: (i, 0)),           # 1/std (f32)
            pl.BlockSpec((block_rows, block_cols), lambda i, j: (i, j)),  # x
        ],
        out_specs=pl.BlockSpec((block_rows, block_cols), lambda i, j: (i, j)),
        compiler_params=pltpu.CompilerParams(
            dimension_semantics=("parallel", "parallel"),
            vmem_limit_bytes=32 * 1024 * 1024,
        ),
        cost_estimate=pl.CostEstimate(
            flops=2 * rows * P_pad,
            transcendentals=0,
            bytes_accessed=2 * rows * P_pad * itemsize,
        ),
    )(mean_rows, inv_std_rows, x2)

    if P_pad != P:
        out2 = out2[:, :P]
    return out2.reshape(N, C, H, W)


if __name__ == "__main__":
    key = jax.random.PRNGKey(0)
    kx, km, ks = jax.random.split(key, 3)

    N, C, H, W = 2, 4, 16, 16
    x = jax.random.normal(kx, (N, C, H, W), dtype=jnp.float32)
    # Deterministic "parameters" for the module (per-channel mean/std).
    mean = jax.random.uniform(km, (C,), dtype=jnp.float32, minval=-0.5, maxval=0.5)
    std = jax.random.uniform(ks, (C,), dtype=jnp.float32, minval=0.5, maxval=1.5)

    out = jax.block_until_ready(normalize(x, mean, std))

    # Reference (plain JAX) check of exact forward semantics.
    ref = (x - mean[None, :, None, None]) / std[None, :, None, None]
    assert out.shape == x.shape and out.dtype == x.dtype
    # rtol relaxed slightly: reciprocal-multiply differs from divide by ~1-2 ulp.
    assert jnp.allclose(out, ref, atol=1e-6, rtol=1e-5), float(jnp.max(jnp.abs(out - ref)))

    print("KERNEL_OK")
</pallas_src>

<mosaic_0001>
module attributes {stable_mosaic.version = 11 : i64} {
  func.func @_normalize_kernel(%arg0: i32, %arg1: i32, %arg2: memref<8x1xf32, #tpu.memory_space<vmem>>, %arg3: memref<8x1xf32, #tpu.memory_space<vmem>>, %arg4: memref<8x256xf32, #tpu.memory_space<vmem>>, %arg5: memref<8x256xf32, #tpu.memory_space<vmem>>) attributes {dimension_semantics = [#tpu.dimension_semantics<parallel>, #tpu.dimension_semantics<parallel>], iteration_bounds = array<i64: 1, 1>, scalar_prefetch = 0 : i64, scratch_operands = 0 : i64, tpu.core_type = #tpu.core_type<tc>, window_params = [{transform_indices = @transform_0, window_bounds = array<i64: 8, 1>}, {transform_indices = @transform_1, window_bounds = array<i64: 8, 1>}, {transform_indices = @transform_2, window_bounds = array<i64: 8, 256>}, {transform_indices = @transform_3, window_bounds = array<i64: 8, 256>}]} {
    %c0 = arith.constant 0 : index
    %c0_0 = arith.constant 0 : index
    %0 = vector.load %arg4[%c0, %c0_0] : memref<8x256xf32, #tpu.memory_space<vmem>>, vector<8x256xf32>
    %c0_1 = arith.constant 0 : index
    %c0_2 = arith.constant 0 : index
    %1 = vector.load %arg2[%c0_1, %c0_2] : memref<8x1xf32, #tpu.memory_space<vmem>>, vector<8x1xf32>
    %2 = vector.broadcast %1 : vector<8x1xf32> to vector<8x256xf32>
    %3 = arith.subf %0, %2 : vector<8x256xf32>
    %c0_3 = arith.constant 0 : index
    %c0_4 = arith.constant 0 : index
    %4 = vector.load %arg3[%c0_3, %c0_4] : memref<8x1xf32, #tpu.memory_space<vmem>>, vector<8x1xf32>
    %5 = vector.broadcast %4 : vector<8x1xf32> to vector<8x256xf32>
    %6 = arith.mulf %3, %5 : vector<8x256xf32>
    %c0_5 = arith.constant 0 : index
    %c0_6 = arith.constant 0 : index
    %7 = vector.load %arg5[%c0_5, %c0_6] : memref<8x256xf32, #tpu.memory_space<vmem>>, vector<8x256xf32>
    tpu.vector_store %arg5[%c0_5, %c0_6], %6 {strides = array<i32>} : memref<8x256xf32, #tpu.memory_space<vmem>>, vector<8x256xf32>,
    return
  }
  func.func @transform_0(%arg0: i32, %arg1: i32) -> (i32, i32) {
    %c0_i32 = arith.constant 0 : i32
    %c0_i32_0 = arith.constant 0 : i32
    return %arg0, %c0_i32 : i32, i32
  }
  func.func @transform_1(%arg0: i32, %arg1: i32) -> (i32, i32) {
    %c0_i32 = arith.constant 0 : i32
    %c0_i32_0 = arith.constant 0 : i32
    return %arg0, %c0_i32 : i32, i32
  }
  func.func @transform_2(%arg0: i32, %arg1: i32) -> (i32, i32) {
    %c0_i32 = arith.constant 0 : i32
    return %arg0, %arg1 : i32, i32
  }
  func.func @transform_3(%arg0: i32, %arg1: i32) -> (i32, i32) {
    %c0_i32 = arith.constant 0 : i32
    return %arg0, %arg1 : i32, i32
  }
}

</mosaic_0001>

<llo_original>
// kernel: tpu_custom_call.1
$region0: #{tpu_custom_call.1}
  #allocation0 [shape = 'u32[]', space=smem, size = 0x4, offset = 0x4, fixed_abs, tag = 'smem constant byte address 0x4 - core index']
  #allocation1 [shape = 'u32[144,128]{1,0:T(1,128)}', space=vmem, size = 0x12000, scoped, tag = 'internal scratch']
  %s0 = inlined_call_operand.vmem [shape: f32[8,1], index: 0, kind: input, shape index: {}]
  %s1 = inlined_call_operand.vmem [shape: f32[8,1], index: 1, kind: input, shape index: {}]
  %s2 = inlined_call_operand.vmem [shape: f32[8,256], index: 2, kind: input, shape index: {}]
  %s3 = inlined_call_operand.hbm [shape: f32[8,256], index: 3, kind: output, shape index: {}]
  %s4 = sld [smem:[#allocation0]]
  $region22: #{tpu_custom_call.1} parent=0
    _
  %s6 = ssub.s32 1, %s4
  %s7 = scalar_select 0, %s6, %s4
  $region1: #{tpu_custom_call.1} parent=0
    #allocation2 [shape = 'u8[8192]{0}', space=vmem, size = 0x2000, scoped, tag = 'output window, operand 0, single buffered']
    #allocation3 [shape = 's32[1]{0}', space=sflag, size = 0x4, scoped, tag = 'scoped memory for tpu_custom_call.1']
    %8 = vsyncpa [#allocation3], 0
    // Predicated region
    $region2: #{tpu_custom_call.1} parent=1 // pred_check
      _
    $region3: #{tpu_custom_call.1} parent=1 // pred_check_branch
      %10 = sbr.rel (0) target = $region5
    $region4: #{tpu_custom_call.1} parent=1 // pred_region
      _
    $region5: #{tpu_custom_call.1} parent=1 // pred_fallthru
      _
    // Predicated region
    $region6: #{tpu_custom_call.1} parent=1 // pred_check
      _
    $region7: #{tpu_custom_call.1} parent=1 // pred_check_branch
      %12 = sbr.rel (0) target = $region9
    $region8: #{tpu_custom_call.1} parent=1 // pred_region
      _
    $region9: #{tpu_custom_call.1} parent=1 // pred_fallthru
      _
    // Predicated region
    $region10: #{tpu_custom_call.1} parent=1 // pred_check
      _
    $region11: #{tpu_custom_call.1} parent=1 // pred_check_branch
      %14 = sbr.rel (0) target = $region13
    $region12: #{tpu_custom_call.1} parent=1 // pred_region
      _
    $region13: #{tpu_custom_call.1} parent=1 // pred_fallthru
      _
    %v15 = vld [vmem:[%s2] sm:$0xff]
    %v16 = vld [vmem:[%s2 + $0x8] sm:$0xff]
    %v17 = vld [vmem:[%s0] sm:$0xff]
    %19 = vset.pattern.permute.xlu0 0
    %20 = vperm.xlu0 %19, %v17
    %v21 = vpop.permute.xlu0 %20
    %v23 = vsub.f32 %v15, %v21
    %v24 = vsub.f32 %v16, %v21
    %v25 = vld [vmem:[%s1] sm:$0xff]
    %27 = vset.pattern.permute.xlu0 0
    %28 = vperm.xlu0 %27, %v25
    %v29 = vpop.permute.xlu0 %28
    %v31 = vmul.f32 %v23, %v29
    %v32 = vmul.f32 %v24, %v29
    %33 = vst [vmem:[#allocation2] sm:$0xff] %v31
    %34 = vst [vmem:[#allocation2 + $0x8] sm:$0xff] %v32
    // Predicated region
    $region14: #{tpu_custom_call.1} parent=1 // pred_check
      _
    $region15: #{tpu_custom_call.1} parent=1 // pred_check_branch
      %36 = sbr.rel (0) target = $region17
    $region16: #{tpu_custom_call.1} parent=1 // pred_region
      %s38 = ssub.s32 256, 256
      %39 = vsyncadd [#allocation3], %s38
      %s41 = sshll.u32 [#allocation2], 4
      %s42 = int_to_ptr.vmem [resolvable:$true] %s41
      %44 = dma.vmem_to_hbm [thread:$0]  %s42, 256, %s3, [#allocation3]
    $region17: #{tpu_custom_call.1} parent=1 // pred_fallthru
      _
    // Predicated region
    $region18: #{tpu_custom_call.1} parent=1 // pred_check
      _
    $region19: #{tpu_custom_call.1} parent=1 // pred_check_branch
      %46 = sbr.rel (0) target = $region21
    $region20: #{tpu_custom_call.1} parent=1 // pred_region
      %47 = dma.done [#allocation3], 256
    $region21: #{tpu_custom_call.1} parent=1 // pred_fallthru
      _
    %48 = vsyncpa [#allocation3], 1

</llo_original>
